<compile_context>
chip_gen: v7x
topology: tpu7x:2x2x1
jax: 0.10.0
libtpu: 0.0.40
codegen_flags: <defaults>
</compile_context>

<pallas_src>
import functools
import math

import jax
import jax.numpy as jnp
from jax.experimental import pallas as pl
from jax.experimental.pallas import tpu as pltpu

HIDDEN = 32               # nn.Linear(dim_in, 32)
MAX_TM = 4096             # packed-row tile cap: ~26 MiB VMEM -> fits v7x 64 MiB
MIN_PARALLEL_ROWS = 512   # below this, a single grid step (2-TC split not worth it)


def _cdiv(a, b):
    return -(-a // b)


def _round_up(x, m):
    return ((x + m - 1) // m) * m


def _mlp_kernel(x_ref, w1_ref, b1_ref, w2_ref, b2_ref, o_ref, *, split, dot_dtype):
    # x_ref : (TM, in_p)                 VMEM (one packed-row tile)
    # w1_ref: (in_p//2, hid_p//2) if split else (in_p, hid_p)   VMEM (resident)
    # b1_ref: (1, hid_p)                 VMEM (resident)
    # w2_ref: (hid_p, out_p)             VMEM (resident)
    # b2_ref: (1, out_p)                 VMEM (resident)
    # o_ref : (TM, out_p)                VMEM
    x = x_ref[...].astype(dot_dtype)
    w1 = w1_ref[...]
    if split:
        # Block-diagonal (kron) packing: the two input halves multiply disjoint
        # but identical diagonal halves of the fc1 weight, so two half-K dots
        # skip the structurally-zero 128x128 MXU tiles (2x fewer fc1 pushes on
        # v5e, neutral on v6e/v7x) and halve the resident fc1 weight.
        half = x.shape[1] // 2
        h = jnp.concatenate(
            [jnp.dot(x[:, :half], w1, preferred_element_type=jnp.float32),
             jnp.dot(x[:, half:], w1, preferred_element_type=jnp.float32)],
            axis=1)
    else:
        h = jnp.dot(x, w1, preferred_element_type=jnp.float32)
    h = jnp.maximum(h + b1_ref[...], 0.0)                      # ReLU (f32)
    y = jnp.dot(h.astype(dot_dtype), w2_ref[...],
                preferred_element_type=jnp.float32)
    y = jnp.maximum(y + b2_ref[...], 0.0)                      # ReLU (f32)
    o_ref[...] = y.astype(o_ref.dtype)


def pack_params(params, dot_dtype=jnp.bfloat16):
    """Precompute lane-dense (block-diagonal) weights + tiled biases (done once).

    dot_dtype=bf16 (default) gives the fast MXU path; pass jnp.float32 for
    strict-accuracy use.
    """
    w1 = params["w1"].astype(jnp.float32)   # (dim_in, hidden)
    b1 = params["b1"].astype(jnp.float32)   # (hidden,)
    w2 = params["w2"].astype(jnp.float32)   # (hidden, dim_out)
    b2 = params["b2"].astype(jnp.float32)   # (dim_out,)

    dim_in, hidden = w1.shape
    dim_out = w2.shape[1]

    # Pack `pack` logical rows per physical row so the output lane dim is 128.
    pack = 128 // dim_out if (dim_out <= 128 and 128 % dim_out == 0) else 1

    # fc1 zero-tile skip: store only one diagonal half of kron(I_pack, w1);
    # enabled when the halves are lane-aligned (keeps slices cheap).
    split = (pack % 2 == 0
             and ((pack // 2) * dim_in) % 128 == 0
             and ((pack // 2) * hidden) % 128 == 0)

    if pack > 1:
        eye1 = jnp.eye(pack // 2 if split else pack, dtype=jnp.float32)
        w1_p = jnp.kron(eye1, w1)                                # half or full kron
        w2_p = jnp.kron(jnp.eye(pack, dtype=jnp.float32), w2)    # (pack*hid, pack*out)
        b1_p = jnp.tile(b1, pack).reshape(1, pack * hidden)
        b2_p = jnp.tile(b2, pack).reshape(1, pack * dim_out)
    else:
        split = False
        w1_p, w2_p = w1, w2
        b1_p = b1.reshape(1, hidden)
        b2_p = b2.reshape(1, dim_out)

    return {
        "w1": w1_p.astype(dot_dtype), "b1": b1_p,               # biases stay f32
        "w2": w2_p.astype(dot_dtype), "b2": b2_p,
        "pack": pack, "split": split, "dot_dtype": dot_dtype,
        "dim_in": dim_in, "dim_out": dim_out, "hidden": hidden,
    }


def mlp_target_forward(x, packed):
    """Pallas forward matching MLP_Target.forward (x.view(-1, dim_in) -> MLP)."""
    dim_in = packed["dim_in"]
    dim_out = packed["dim_out"]
    hidden = packed["hidden"]
    pack = packed["pack"]
    split = packed["split"]
    dot_dtype = packed["dot_dtype"]

    w1_p, b1_p, w2_p, b2_p = packed["w1"], packed["b1"], packed["w2"], packed["b2"]
    in_p = pack * dim_in
    hid_p = pack * hidden
    out_p = pack * dim_out       # == 128 when packing applies

    x2d = x.reshape(-1, dim_in)  # torch: x.view(-1, dim_in); keep caller dtype
    rows = x2d.shape[0]

    # --- row tiling: minimal padding, >=2 grid steps for mid/large inputs ---
    packed_rows = _cdiv(rows, pack)
    if packed_rows >= MIN_PARALLEL_ROWS:
        n_tiles = max(2, _cdiv(packed_rows, MAX_TM))
    else:
        n_tiles = 1
    tm = _round_up(_cdiv(packed_rows, n_tiles), 8)
    n_tiles = _cdiv(packed_rows, tm)
    packed_rows_padded = n_tiles * tm
    total_rows_padded = packed_rows_padded * pack

    if total_rows_padded != rows:            # tiny tail pad only; skipped if aligned
        x2d = jnp.pad(x2d, ((0, total_rows_padded - rows), (0, 0)))
    # Row-major reshape: physical row p holds logical rows p*pack .. p*pack+pack-1.
    x_packed = x2d.reshape(packed_rows_padded, in_p)

    # --- advisory cost estimate (split halves the fc1 MACs) ------------------
    fc1_macs = (in_p * hid_p) // (2 if split else 1)
    flops = 2 * (fc1_macs + hid_p * out_p) * packed_rows_padded
    w_bytes = (w1_p.size * w1_p.dtype.itemsize + w2_p.size * w2_p.dtype.itemsize
               + b1_p.size * 4 + b2_p.size * 4)
    bytes_accessed = (x_packed.size * x_packed.dtype.itemsize
                      + packed_rows_padded * out_p * 4 + w_bytes)

    # --- VMEM budget: double-buffered x/out tiles + f32 intermediate + casts --
    dot_bytes = jnp.dtype(dot_dtype).itemsize
    per_row = (2 * in_p * x_packed.dtype.itemsize      # x (double buffered)
               + 2 * out_p * 4                         # out (double buffered)
               + hid_p * 4                             # f32 hidden intermediate
               + (in_p + hid_p) * dot_bytes)           # bf16 cast copies
    vmem_limit = int(min(56 << 20, max(32 << 20, tm * per_row + w_bytes + (4 << 20))))

    kernel = functools.partial(_mlp_kernel, split=split, dot_dtype=dot_dtype)

    out_packed = pl.pallas_call(
        kernel,
        out_shape=jax.ShapeDtypeStruct((packed_rows_padded, out_p), jnp.float32),
        grid_spec=pltpu.PrefetchScalarGridSpec(
            num_scalar_prefetch=0,
            grid=(n_tiles,),
            in_specs=[
                pl.BlockSpec((tm, in_p), lambda i: (i, 0)),       # activations: tiled
                pl.BlockSpec(w1_p.shape, lambda i: (0, 0)),       # weights: resident
                pl.BlockSpec(b1_p.shape, lambda i: (0, 0)),
                pl.BlockSpec(w2_p.shape, lambda i: (0, 0)),
                pl.BlockSpec(b2_p.shape, lambda i: (0, 0)),
            ],
            out_specs=pl.BlockSpec((tm, out_p), lambda i: (i, 0)),
        ),
        compiler_params=pltpu.CompilerParams(
            dimension_semantics=("parallel",),        # no reduction axis; megacore-OK
            vmem_limit_bytes=vmem_limit,
        ),
        cost_estimate=pl.CostEstimate(
            flops=int(flops), transcendentals=0,
            bytes_accessed=int(bytes_accessed)),
    )(x_packed, w1_p, b1_p, w2_p, b2_p)

    # Unpack: row-major contiguity -> pure layout plumbing; slice only if padded.
    out = out_packed.reshape(total_rows_padded, dim_out)
    if total_rows_padded != rows:
        out = out[:rows]
    return out


def init_params(key, dim_in, dim_out):
    """Deterministic init mimicking nn.Linear's U(-1/sqrt(fan_in), 1/sqrt(fan_in))."""
    k1, k2, k3, k4 = jax.random.split(key, 4)
    bound1 = 1.0 / math.sqrt(dim_in)
    bound2 = 1.0 / math.sqrt(HIDDEN)
    # Stored as (in, out) == transpose of torch's (out, in) weight layout.
    w1 = jax.random.uniform(k1, (dim_in, HIDDEN), jnp.float32, -bound1, bound1)
    b1 = jax.random.uniform(k2, (HIDDEN,), jnp.float32, -bound1, bound1)
    w2 = jax.random.uniform(k3, (HIDDEN, dim_out), jnp.float32, -bound2, bound2)
    b2 = jax.random.uniform(k4, (dim_out,), jnp.float32, -bound2, bound2)
    return {"w1": w1, "b1": b1, "w2": w2, "b2": b2}


def mlp_target_ref(x, params, dot_dtype=jnp.float32):
    """Pure-JAX reference of the PyTorch forward (optionally with bf16 dots)."""
    dim_in = params["w1"].shape[0]
    x2d = x.reshape(-1, dim_in)
    h = jnp.dot(x2d.astype(dot_dtype), params["w1"].astype(dot_dtype),
                preferred_element_type=jnp.float32) + params["b1"]
    h = jnp.maximum(h, 0.0)
    y = jnp.dot(h.astype(dot_dtype), params["w2"].astype(dot_dtype),
                preferred_element_type=jnp.float32) + params["b2"]
    return jnp.maximum(y, 0.0)


if __name__ == "__main__":
    dim_in, dim_out = 16, 8
    key = jax.random.PRNGKey(0)
    kx, kx2, kx3, kp = jax.random.split(key, 4)

    params = init_params(kp, dim_in, dim_out)
    packed_bf16 = pack_params(params)                          # fast MXU path
    packed_f32 = pack_params(params, dot_dtype=jnp.float32)    # strict-accuracy path

    # Primary test: x of shape (2, 4, 16, 16); view(-1, 16) -> (128, 16).
    x = jax.random.normal(kx, (2, 4, 16, 16), jnp.float32)

    # f32 path: exact plumbing check against the f32 reference.
    out_f32 = jax.block_until_ready(mlp_target_forward(x, packed_f32))
    ref_f32 = mlp_target_ref(x, params)
    assert out_f32.shape == (128, dim_out), out_f32.shape
    assert jnp.allclose(out_f32, ref_f32, atol=1e-5, rtol=1e-5), "f32 mismatch"

    # bf16 path: compare against a bf16-input reference (same rounding model).
    out_bf = jax.block_until_ready(mlp_target_forward(x, packed_bf16))
    ref_bf = mlp_target_ref(x, params, dot_dtype=jnp.bfloat16)
    assert out_bf.shape == (128, dim_out), out_bf.shape
    assert jnp.allclose(out_bf, ref_bf, atol=1e-3, rtol=1e-3), "bf16 mismatch"

    # Pad path: row count not a multiple of the packing factor.
    x2 = jax.random.normal(kx2, (200, dim_in), jnp.float32)
    out2 = jax.block_until_ready(mlp_target_forward(x2, packed_bf16))
    ref2 = mlp_target_ref(x2, params, dot_dtype=jnp.bfloat16)
    assert out2.shape == (200, dim_out), out2.shape
    assert jnp.allclose(out2, ref2, atol=1e-3, rtol=1e-3), "bf16 mismatch (padded)"

    # Multi-tile grid path: >= 2 grid steps with a ragged tail.
    x3 = jax.random.normal(kx3, (8200, dim_in), jnp.float32)
    out3 = jax.block_until_ready(mlp_target_forward(x3, packed_bf16))
    ref3 = mlp_target_ref(x3, params, dot_dtype=jnp.bfloat16)
    assert out3.shape == (8200, dim_out), out3.shape
    assert jnp.allclose(out3, ref3, atol=1e-3, rtol=1e-3), "bf16 mismatch (multi-tile)"

    print("KERNEL_OK")
</pallas_src>

<mosaic_0001>
module attributes {stable_mosaic.version = 11 : i64} {
  func.func @_mlp_kernel(%arg0: i32, %arg1: memref<8x256xf32, #tpu.memory_space<vmem>>, %arg2: memref<128x256xf32, #tpu.memory_space<vmem>>, %arg3: memref<1x512xf32, #tpu.memory_space<vmem>>, %arg4: memref<512x128xf32, #tpu.memory_space<vmem>>, %arg5: memref<1x128xf32, #tpu.memory_space<vmem>>, %arg6: memref<8x128xf32, #tpu.memory_space<vmem>>) attributes {dimension_semantics = [#tpu.dimension_semantics<parallel>], iteration_bounds = array<i64: 1>, scalar_prefetch = 0 : i64, scratch_operands = 0 : i64, tpu.core_type = #tpu.core_type<tc>, window_params = [{transform_indices = @transform_0, window_bounds = array<i64: 8, 256>}, {pipeline_mode = #tpu.pipeline_mode<synchronous>, transform_indices = @transform_1, window_bounds = array<i64: 128, 256>}, {pipeline_mode = #tpu.pipeline_mode<synchronous>, transform_indices = @transform_2, window_bounds = array<i64: 1, 512>}, {pipeline_mode = #tpu.pipeline_mode<synchronous>, transform_indices = @transform_3, window_bounds = array<i64: 512, 128>}, {pipeline_mode = #tpu.pipeline_mode<synchronous>, transform_indices = @transform_4, window_bounds = array<i64: 1, 128>}, {transform_indices = @transform_5, window_bounds = array<i64: 8, 128>}]} {
    %c0 = arith.constant 0 : index
    %c0_0 = arith.constant 0 : index
    %0 = vector.load %arg1[%c0, %c0_0] : memref<8x256xf32, #tpu.memory_space<vmem>>, vector<8x256xf32>
    %c0_1 = arith.constant 0 : index
    %c0_2 = arith.constant 0 : index
    %1 = vector.load %arg2[%c0_1, %c0_2] : memref<128x256xf32, #tpu.memory_space<vmem>>, vector<128x256xf32>
    %2 = vector.extract_strided_slice %0 {offsets = [0, 0], sizes = [8, 128], strides = [1, 1]} : vector<8x256xf32> to vector<8x128xf32>
    %cst = arith.constant dense<0.000000e+00> : vector<8x256xf32>
    %3 = tpu.matmul %2, %1, %cst {dimension_numbers = #tpu.dot_dimension_numbers<[1], [0], [0], [1], [0, 0, 1, 1], [], []>} : vector<8x128xf32>, vector<128x256xf32>, vector<8x256xf32> -> vector<8x256xf32>
    %4 = vector.extract_strided_slice %0 {offsets = [0, 128], sizes = [8, 128], strides = [1, 1]} : vector<8x256xf32> to vector<8x128xf32>
    %cst_3 = arith.constant dense<0.000000e+00> : vector<8x256xf32>
    %5 = tpu.matmul %4, %1, %cst_3 {dimension_numbers = #tpu.dot_dimension_numbers<[1], [0], [0], [1], [0, 0, 1, 1], [], []>} : vector<8x128xf32>, vector<128x256xf32>, vector<8x256xf32> -> vector<8x256xf32>
    %6 = tpu.concatenate %3, %5 in 1 : vector<8x256xf32>, vector<8x256xf32> -> vector<8x512xf32>
    %c0_4 = arith.constant 0 : index
    %c0_5 = arith.constant 0 : index
    %7 = vector.load %arg3[%c0_4, %c0_5] : memref<1x512xf32, #tpu.memory_space<vmem>>, vector<1x512xf32>
    %8 = vector.broadcast %7 : vector<1x512xf32> to vector<8x512xf32>
    %9 = arith.addf %6, %8 : vector<8x512xf32>
    %cst_6 = arith.constant 0.000000e+00 : f32
    %10 = vector.broadcast %cst_6 : f32 to vector<8x512xf32>
    %11 = arith.maximumf %9, %10 : vector<8x512xf32>
    %c0_7 = arith.constant 0 : index
    %c0_8 = arith.constant 0 : index
    %12 = vector.load %arg4[%c0_7, %c0_8] : memref<512x128xf32, #tpu.memory_space<vmem>>, vector<512x128xf32>
    %cst_9 = arith.constant dense<0.000000e+00> : vector<8x128xf32>
    %13 = tpu.matmul %11, %12, %cst_9 {dimension_numbers = #tpu.dot_dimension_numbers<[1], [0], [0], [1], [0, 0, 1, 1], [], []>} : vector<8x512xf32>, vector<512x128xf32>, vector<8x128xf32> -> vector<8x128xf32>
    %c0_10 = arith.constant 0 : index
    %c0_11 = arith.constant 0 : index
    %14 = vector.load %arg5[%c0_10, %c0_11] : memref<1x128xf32, #tpu.memory_space<vmem>>, vector<1x128xf32>
    %15 = vector.broadcast %14 : vector<1x128xf32> to vector<8x128xf32>
    %16 = arith.addf %13, %15 : vector<8x128xf32>
    %cst_12 = arith.constant 0.000000e+00 : f32
    %17 = vector.broadcast %cst_12 : f32 to vector<8x128xf32>
    %18 = arith.maximumf %16, %17 : vector<8x128xf32>
    %c0_13 = arith.constant 0 : index
    %c0_14 = arith.constant 0 : index
    %19 = vector.load %arg6[%c0_13, %c0_14] : memref<8x128xf32, #tpu.memory_space<vmem>>, vector<8x128xf32>
    tpu.vector_store %arg6[%c0_13, %c0_14], %18 {strides = array<i32>} : memref<8x128xf32, #tpu.memory_space<vmem>>, vector<8x128xf32>,
    return
  }
  func.func @transform_0(%arg0: i32) -> (i32, i32) {
    %c0_i32 = arith.constant 0 : i32
    %c0_i32_0 = arith.constant 0 : i32
    return %arg0, %c0_i32 : i32, i32
  }
  func.func @transform_1(%arg0: i32) -> (i32, i32) {
    %c0_i32 = arith.constant 0 : i32
    %c0_i32_0 = arith.constant 0 : i32
    %c0_i32_1 = arith.constant 0 : i32
    return %c0_i32, %c0_i32_0 : i32, i32
  }
  func.func @transform_2(%arg0: i32) -> (i32, i32) {
    %c0_i32 = arith.constant 0 : i32
    %c0_i32_0 = arith.constant 0 : i32
    %c0_i32_1 = arith.constant 0 : i32
    return %c0_i32, %c0_i32_0 : i32, i32
  }
  func.func @transform_3(%arg0: i32) -> (i32, i32) {
    %c0_i32 = arith.constant 0 : i32
    %c0_i32_0 = arith.constant 0 : i32
    %c0_i32_1 = arith.constant 0 : i32
    return %c0_i32, %c0_i32_0 : i32, i32
  }
  func.func @transform_4(%arg0: i32) -> (i32, i32) {
    %c0_i32 = arith.constant 0 : i32
    %c0_i32_0 = arith.constant 0 : i32
    %c0_i32_1 = arith.constant 0 : i32
    return %c0_i32, %c0_i32_0 : i32, i32
  }
  func.func @transform_5(%arg0: i32) -> (i32, i32) {
    %c0_i32 = arith.constant 0 : i32
    %c0_i32_0 = arith.constant 0 : i32
    return %arg0, %c0_i32 : i32, i32
  }
}

</mosaic_0001>

<llo_original>
// kernel: tpu_custom_call.1
$region0: #{tpu_custom_call.1}
  #allocation0 [shape = 'u32[]', space=smem, size = 0x4, offset = 0x4, fixed_abs, tag = 'smem constant byte address 0x4 - core index']
  #allocation1 [shape = 'u32[144,128]{1,0:T(1,128)}', space=vmem, size = 0x12000, scoped, tag = 'internal scratch']
  %s0 = inlined_call_operand.hbm [shape: f32[8,256], index: 0, kind: input, shape index: {}]
  %s1 = inlined_call_operand.hbm [shape: f32[128,256], index: 1, kind: input, shape index: {}]
  %s2 = inlined_call_operand.vmem [shape: f32[1,512], index: 2, kind: input, shape index: {}]
  %s3 = inlined_call_operand.hbm [shape: f32[512,128], index: 3, kind: input, shape index: {}]
  %s4 = inlined_call_operand.vmem [shape: f32[1,128], index: 4, kind: input, shape index: {}]
  %s5 = inlined_call_operand.hbm [shape: f32[8,128], index: 5, kind: output, shape index: {}]
  %s6 = sld [smem:[#allocation0]]
  $region42: #{tpu_custom_call.1} parent=0
    _
  %s8 = ssub.s32 1, %s6
  %s9 = scalar_select 0, %s8, %s6
  $region1: #{tpu_custom_call.1} parent=0
    #allocation2 [shape = 'u8[8192]{0}', space=vmem, size = 0x2000, scoped, tag = 'input window, operand 0, single buffered']
    #allocation3 [shape = 's32[1]{0}', space=sflag, size = 0x4, scoped, tag = 'scoped memory for tpu_custom_call.1']
    #allocation4 [shape = 's32[1]{0}', space=sflag, size = 0x4, scoped, tag = 'scoped memory for tpu_custom_call.1']
    #allocation5 [shape = 'u8[131072]{0}', space=vmem, size = 0x20000, scoped, tag = 'input window, operand 1, single buffered']
    #allocation6 [shape = 's32[1]{0}', space=sflag, size = 0x4, scoped, tag = 'scoped memory for tpu_custom_call.1']
    #allocation7 [shape = 'u8[262144]{0}', space=vmem, size = 0x40000, scoped, tag = 'input window, operand 3, single buffered']
    #allocation8 [shape = 'u8[4096]{0}', space=vmem, size = 0x1000, scoped, tag = 'output window, operand 0, single buffered']
    %10 = vsyncpa [#allocation3], 0
    %11 = vsyncpa [#allocation6], 0
    %12 = vsyncpa [#allocation4], 0
    // Predicated region
    $region2: #{tpu_custom_call.1} parent=1 // pred_check
      _
    $region3: #{tpu_custom_call.1} parent=1 // pred_check_branch
      %14 = sbr.rel (0) target = $region5
    $region4: #{tpu_custom_call.1} parent=1 // pred_region
      %s16 = ssub.s32 256, 256
      %17 = vsyncadd [#allocation3], %s16
      %s19 = sshll.u32 [#allocation2], 4
      %s20 = int_to_ptr.vmem [resolvable:$true] %s19
      %22 = dma.hbm_to_vmem [thread:$0]  %s0, 256, %s20, [#allocation3]
    $region5: #{tpu_custom_call.1} parent=1 // pred_fallthru
      _
    // Predicated region
    $region6: #{tpu_custom_call.1} parent=1 // pred_check
      _
    $region7: #{tpu_custom_call.1} parent=1 // pred_check_branch
      %24 = sbr.rel (0) target = $region9
    $region8: #{tpu_custom_call.1} parent=1 // pred_region
      %s26 = ssub.s32 4096, 4096
      %27 = vsyncadd [#allocation6], %s26
      %s28 = sshll.u32 [#allocation5], 4
      %s29 = int_to_ptr.vmem [resolvable:$true] %s28
      %34 = dma.hbm_to_vmem [thread:$0]  %s1, 4096, %s29, [#allocation6], 256, 256, 16
    $region9: #{tpu_custom_call.1} parent=1 // pred_fallthru
      _
    // Predicated region
    $region10: #{tpu_custom_call.1} parent=1 // pred_check
      _
    $region11: #{tpu_custom_call.1} parent=1 // pred_check_branch
      %36 = sbr.rel (0) target = $region13
    $region12: #{tpu_custom_call.1} parent=1 // pred_region
      _
    $region13: #{tpu_custom_call.1} parent=1 // pred_fallthru
      _
    // Predicated region
    $region14: #{tpu_custom_call.1} parent=1 // pred_check
      _
    $region15: #{tpu_custom_call.1} parent=1 // pred_check_branch
      %38 = sbr.rel (0) target = $region17
    $region16: #{tpu_custom_call.1} parent=1 // pred_region
      %s40 = ssub.s32 8192, 8192
      %41 = vsyncadd [#allocation6], %s40
      %s42 = sshll.u32 [#allocation7], 4
      %s43 = int_to_ptr.vmem [resolvable:$true] %s42
      %48 = dma.hbm_to_vmem [thread:$0]  %s3, 8192, %s43, [#allocation6], 128, 128, 8
    $region17: #{tpu_custom_call.1} parent=1 // pred_fallthru
      _
    // Predicated region
    $region18: #{tpu_custom_call.1} parent=1 // pred_check
      _
    $region19: #{tpu_custom_call.1} parent=1 // pred_check_branch
      %50 = sbr.rel (0) target = $region21
    $region20: #{tpu_custom_call.1} parent=1 // pred_region
      _
    $region21: #{tpu_custom_call.1} parent=1 // pred_fallthru
      _
    // Predicated region
    $region22: #{tpu_custom_call.1} parent=1 // pred_check
      _
    $region23: #{tpu_custom_call.1} parent=1 // pred_check_branch
      %52 = sbr.rel (0) target = $region25
    $region24: #{tpu_custom_call.1} parent=1 // pred_region
      %53 = dma.done [#allocation3], 256
    $region25: #{tpu_custom_call.1} parent=1 // pred_fallthru
      _
    // Predicated region
    $region26: #{tpu_custom_call.1} parent=1 // pred_check
      _
    $region27: #{tpu_custom_call.1} parent=1 // pred_check_branch
      %55 = sbr.rel (0) target = $region29
    $region28: #{tpu_custom_call.1} parent=1 // pred_region
      %56 = dma.done [#allocation6], 4096
    $region29: #{tpu_custom_call.1} parent=1 // pred_fallthru
      _
    // Predicated region
    $region30: #{tpu_custom_call.1} parent=1 // pred_check
      _
    $region31: #{tpu_custom_call.1} parent=1 // pred_check_branch
      %58 = sbr.rel (0) target = $region33
    $region32: #{tpu_custom_call.1} parent=1 // pred_region
      %59 = dma.done [#allocation6], 8192
    $region33: #{tpu_custom_call.1} parent=1 // pred_fallthru
      _
    %v60 = vld [vmem:[#allocation2] sm:$0xff]
    %v61 = vld [vmem:[#allocation2 + $0x8] sm:$0xff]
    %v62 = vld [vmem:[#allocation5] sm:$0xff]
    %v63 = vld [vmem:[#allocation5 + $0x8] sm:$0xff]
    %v64 = vld [vmem:[#allocation5 + $0x10] sm:$0xff]
    %v65 = vld [vmem:[#allocation5 + $0x18] sm:$0xff]
    %v66 = vld [vmem:[#allocation5 + $0x20] sm:$0xff]
    %v67 = vld [vmem:[#allocation5 + $0x28] sm:$0xff]
    %v68 = vld [vmem:[#allocation5 + $0x30] sm:$0xff]
    %v69 = vld [vmem:[#allocation5 + $0x38] sm:$0xff]
    %v70 = vld [vmem:[#allocation5 + $0x40] sm:$0xff]
    %v71 = vld [vmem:[#allocation5 + $0x48] sm:$0xff]
    %v72 = vld [vmem:[#allocation5 + $0x50] sm:$0xff]
    %v73 = vld [vmem:[#allocation5 + $0x58] sm:$0xff]
    %v74 = vld [vmem:[#allocation5 + $0x60] sm:$0xff]
    %v75 = vld [vmem:[#allocation5 + $0x68] sm:$0xff]
    %v76 = vld [vmem:[#allocation5 + $0x70] sm:$0xff]
    %v77 = vld [vmem:[#allocation5 + $0x78] sm:$0xff]
    %v78 = vld [vmem:[#allocation5 + $0x80] sm:$0xff]
    %v79 = vld [vmem:[#allocation5 + $0x88] sm:$0xff]
    %v80 = vld [vmem:[#allocation5 + $0x90] sm:$0xff]
    %v81 = vld [vmem:[#allocation5 + $0x98] sm:$0xff]
    %v82 = vld [vmem:[#allocation5 + $0xa0] sm:$0xff]
    %v83 = vld [vmem:[#allocation5 + $0xa8] sm:$0xff]
    %v84 = vld [vmem:[#allocation5 + $0xb0] sm:$0xff]
    %v85 = vld [vmem:[#allocation5 + $0xb8] sm:$0xff]
    %v86 = vld [vmem:[#allocation5 + $0xc0] sm:$0xff]
    %v87 = vld [vmem:[#allocation5 + $0xc8] sm:$0xff]
    %v88 = vld [vmem:[#allocation5 + $0xd0] sm:$0xff]
    %v89 = vld [vmem:[#allocation5 + $0xd8] sm:$0xff]
    %v90 = vld [vmem:[#allocation5 + $0xe0] sm:$0xff]
    %v91 = vld [vmem:[#allocation5 + $0xe8] sm:$0xff]
    %v92 = vld [vmem:[#allocation5 + $0xf0] sm:$0xff]
    %v93 = vld [vmem:[#allocation5 + $0xf8] sm:$0xff]
    %94 = vmatprep.subr.mxu0 %v63
    %95 = vmatpush1.msra.mxu0 %v62
    %96 = vmatprep.subr.mxu0 %v65
    %97 = vmatpush1.msra.mxu0 %v64
    %98 = vmatprep.subr.mxu0 %v67
    %99 = vmatpush1.msra.mxu0 %v66
    %100 = vmatprep.subr.mxu0 %v69
    %101 = vmatpush1.msra.mxu0 %v68
    %102 = vmatprep.subr.mxu0 %v71
    %103 = vmatpush1.msra.mxu0 %v70
    %104 = vmatprep.subr.mxu0 %v73
    %105 = vmatpush1.msra.mxu0 %v72
    %106 = vmatprep.subr.mxu0 %v75
    %107 = vmatpush1.msra.mxu0 %v74
    %108 = vmatprep.subr.mxu0 %v77
    %109 = vmatpush1.msra.mxu0 %v76
    %110 = vmatprep.subr.mxu0 %v79
    %111 = vmatpush1.msra.mxu0 %v78
    %112 = vmatprep.subr.mxu0 %v81
    %113 = vmatpush1.msra.mxu0 %v80
    %114 = vmatprep.subr.mxu0 %v83
    %115 = vmatpush1.msra.mxu0 %v82
    %116 = vmatprep.subr.mxu0 %v85
    %117 = vmatpush1.msra.mxu0 %v84
    %118 = vmatprep.subr.mxu0 %v87
    %119 = vmatpush1.msra.mxu0 %v86
    %120 = vmatprep.subr.mxu0 %v89
    %121 = vmatpush1.msra.mxu0 %v88
    %122 = vmatprep.subr.mxu0 %v91
    %123 = vmatpush1.msra.mxu0 %v90
    %124 = vmatprep.subr.mxu0 %v93
    %125 = vmatpush1.msra.mxu0 %v92
    %126 = vmatprep.subr.mxu0 0.0
    %127 = vmatpush1.msra.mxu0 0.0
    %128 = vmatprep.subr.mxu0 0.0
    %129 = vmatpush1.msra.mxu0 0.0
    %130 = vmatprep.subr.mxu0 0.0
    %131 = vmatpush1.msra.mxu0 0.0
    %132 = vmatprep.subr.mxu0 0.0
    %133 = vmatpush1.msra.mxu0 0.0
    %134 = vmatprep.subr.mxu0 0.0
    %135 = vmatpush1.msra.mxu0 0.0
    %136 = vmatprep.subr.mxu0 0.0
    %137 = vmatpush1.msra.mxu0 0.0
    %138 = vmatprep.subr.mxu0 0.0
    %139 = vmatpush1.msra.mxu0 0.0
    %140 = vmatprep.subr.mxu0 0.0
    %141 = vmatpush1.msra.mxu0 0.0
    %142 = vmatprep.subr.mxu0 0.0
    %143 = vmatpush1.msra.mxu0 0.0
    %144 = vmatprep.subr.mxu0 0.0
    %145 = vmatpush1.msra.mxu0 0.0
    %146 = vmatprep.subr.mxu0 0.0
    %147 = vmatpush1.msra.mxu0 0.0
    %148 = vmatprep.subr.mxu0 0.0
    %149 = vmatpush1.msra.mxu0 0.0
    %150 = vmatprep.subr.mxu0 0.0
    %151 = vmatpush1.msra.mxu0 0.0
    %152 = vmatprep.subr.mxu0 0.0
    %153 = vmatpush1.msra.mxu0 0.0
    %154 = vmatprep.subr.mxu0 0.0
    %155 = vmatpush1.msra.mxu0 0.0
    %156 = vmatprep.subr.mxu0 0.0
    %157 = vmatpush1.msra.mxu0 0.0
    %158 = vmatprep.mubr.f32.mxu0 0.0
    %159 = vmatmul.mubr.f32.gmra.mrb[0].mxu0 %v60
    %v160 = vpop.f32.mrb[0].mxu0
    %v161 = vadd.f32 0.0, %v160
    %v162 = vpop.f32.mrb[0].mxu0
    %v163 = vadd.f32 0.0, %v162
    %164 = vdwg.mxu0
    %165 = vmatprep.subr.mxu0 %v63
    %166 = vmatpush1.msra.mxu0 %v62
    %167 = vmatprep.subr.mxu0 %v65
    %168 = vmatpush1.msra.mxu0 %v64
    %169 = vmatprep.subr.mxu0 %v67
    %170 = vmatpush1.msra.mxu0 %v66
    %171 = vmatprep.subr.mxu0 %v69
    %172 = vmatpush1.msra.mxu0 %v68
    %173 = vmatprep.subr.mxu0 %v71
    %174 = vmatpush1.msra.mxu0 %v70
    %175 = vmatprep.subr.mxu0 %v73
    %176 = vmatpush1.msra.mxu0 %v72
    %177 = vmatprep.subr.mxu0 %v75
    %178 = vmatpush1.msra.mxu0 %v74
    %179 = vmatprep.subr.mxu0 %v77
    %180 = vmatpush1.msra.mxu0 %v76
    %181 = vmatprep.subr.mxu0 %v79
    %182 = vmatpush1.msra.mxu0 %v78
    %183 = vmatprep.subr.mxu0 %v81
    %184 = vmatpush1.msra.mxu0 %v80
    %185 = vmatprep.subr.mxu0 %v83
    %186 = vmatpush1.msra.mxu0 %v82
    %187 = vmatprep.subr.mxu0 %v85
    %188 = vmatpush1.msra.mxu0 %v84
    %189 = vmatprep.subr.mxu0 %v87
    %190 = vmatpush1.msra.mxu0 %v86
    %191 = vmatprep.subr.mxu0 %v89
    %192 = vmatpush1.msra.mxu0 %v88
    %193 = vmatprep.subr.mxu0 %v91
    %194 = vmatpush1.msra.mxu0 %v90
    %195 = vmatprep.subr.mxu0 %v93
    %196 = vmatpush1.msra.mxu0 %v92
    %197 = vmatprep.subr.mxu0 0.0
    %198 = vmatpush1.msra.mxu0 0.0
    %199 = vmatprep.subr.mxu0 0.0
    %200 = vmatpush1.msra.mxu0 0.0
    %201 = vmatprep.subr.mxu0 0.0
    %202 = vmatpush1.msra.mxu0 0.0
    %203 = vmatprep.subr.mxu0 0.0
    %204 = vmatpush1.msra.mxu0 0.0
    %205 = vmatprep.subr.mxu0 0.0
    %206 = vmatpush1.msra.mxu0 0.0
    %207 = vmatprep.subr.mxu0 0.0
    %208 = vmatpush1.msra.mxu0 0.0
    %209 = vmatprep.subr.mxu0 0.0
    %210 = vmatpush1.msra.mxu0 0.0
    %211 = vmatprep.subr.mxu0 0.0
    %212 = vmatpush1.msra.mxu0 0.0
    %213 = vmatprep.subr.mxu0 0.0
    %214 = vmatpush1.msra.mxu0 0.0
    %215 = vmatprep.subr.mxu0 0.0
    %216 = vmatpush1.msra.mxu0 0.0
    %217 = vmatprep.subr.mxu0 0.0
    %218 = vmatpush1.msra.mxu0 0.0
    %219 = vmatprep.subr.mxu0 0.0
    %220 = vmatpush1.msra.mxu0 0.0
    %221 = vmatprep.subr.mxu0 0.0
    %222 = vmatpush1.msra.mxu0 0.0
    %223 = vmatprep.subr.mxu0 0.0
    %224 = vmatpush1.msra.mxu0 0.0
    %225 = vmatprep.subr.mxu0 0.0
    %226 = vmatpush1.msra.mxu0 0.0
    %227 = vmatprep.subr.mxu0 0.0
    %228 = vmatpush1.msra.mxu0 0.0
    %229 = vmatprep.mubr.f32.mxu0 0.0
    %230 = vmatmul.mubr.f32.gmra.mrb[0].mxu0 %v61
    %v231 = vpop.f32.mrb[0].mxu0
    %v232 = vadd.f32 0.0, %v231
    %v233 = vpop.f32.mrb[0].mxu0
    %v234 = vadd.f32 0.0, %v233
    %235 = vdwg.mxu0
    %v236 = vld [vmem:[%s2] sm:$0xf]
    %v238 = vlaneseq
    %v239 = vshrl.u32 %v238, 7
    %v240 = vsub.s32 0, %v239
    %v241 = vrot.slane %v236, %v240
    %v242 = vlaneseq
    %v243 = vshrl.u32 %v242, 7
    %v244 = vsub.s32 1, %v243
    %v245 = vrot.slane %v236, %v244
    %v246 = vlaneseq
    %v247 = vshrl.u32 %v246, 7
    %v248 = vsub.s32 2, %v247
    %v249 = vrot.slane %v236, %v248
    %v250 = vlaneseq
    %v251 = vshrl.u32 %v250, 7
    %v252 = vsub.s32 3, %v251
    %v253 = vrot.slane %v236, %v252
    %v258 = vadd.f32 %v161, %v241
    %v259 = vadd.f32 %v163, %v245
    %v260 = vadd.f32 %v232, %v249
    %v261 = vadd.f32 %v234, %v253
    %v262 = vmax.f32 %v258, 0.0
    %v263 = vmax.f32 %v259, 0.0
    %v264 = vmax.f32 %v260, 0.0
    %v265 = vmax.f32 %v261, 0.0
    %v266 = vld [vmem:[#allocation7] sm:$0xff]
    %v267 = vld [vmem:[#allocation7 + $0x8] sm:$0xff]
    %v268 = vld [vmem:[#allocation7 + $0x10] sm:$0xff]
    %v269 = vld [vmem:[#allocation7 + $0x18] sm:$0xff]
    %v270 = vld [vmem:[#allocation7 + $0x20] sm:$0xff]
    %v271 = vld [vmem:[#allocation7 + $0x28] sm:$0xff]
    %v272 = vld [vmem:[#allocation7 + $0x30] sm:$0xff]
    %v273 = vld [vmem:[#allocation7 + $0x38] sm:$0xff]
    %v274 = vld [vmem:[#allocation7 + $0x40] sm:$0xff]
    %v275 = vld [vmem:[#allocation7 + $0x48] sm:$0xff]
    %v276 = vld [vmem:[#allocation7 + $0x50] sm:$0xff]
    %v277 = vld [vmem:[#allocation7 + $0x58] sm:$0xff]
    %v278 = vld [vmem:[#allocation7 + $0x60] sm:$0xff]
    %v279 = vld [vmem:[#allocation7 + $0x68] sm:$0xff]
    %v280 = vld [vmem:[#allocation7 + $0x70] sm:$0xff]
    %v281 = vld [vmem:[#allocation7 + $0x78] sm:$0xff]
    %v282 = vld [vmem:[#allocation7 + $0x80] sm:$0xff]
    %v283 = vld [vmem:[#allocation7 + $0x88] sm:$0xff]
    %v284 = vld [vmem:[#allocation7 + $0x90] sm:$0xff]
    %v285 = vld [vmem:[#allocation7 + $0x98] sm:$0xff]
    %v286 = vld [vmem:[#allocation7 + $0xa0] sm:$0xff]
    %v287 = vld [vmem:[#allocation7 + $0xa8] sm:$0xff]
    %v288 = vld [vmem:[#allocation7 + $0xb0] sm:$0xff]
    %v289 = vld [vmem:[#allocation7 + $0xb8] sm:$0xff]
    %v290 = vld [vmem:[#allocation7 + $0xc0] sm:$0xff]
    %v291 = vld [vmem:[#allocation7 + $0xc8] sm:$0xff]
    %v292 = vld [vmem:[#allocation7 + $0xd0] sm:$0xff]
    %v293 = vld [vmem:[#allocation7 + $0xd8] sm:$0xff]
    %v294 = vld [vmem:[#allocation7 + $0xe0] sm:$0xff]
    %v295 = vld [vmem:[#allocation7 + $0xe8] sm:$0xff]
    %v296 = vld [vmem:[#allocation7 + $0xf0] sm:$0xff]
    %v297 = vld [vmem:[#allocation7 + $0xf8] sm:$0xff]
    %v298 = vld [vmem:[#allocation7 + $0x100] sm:$0xff]
    %v299 = vld [vmem:[#allocation7 + $0x108] sm:$0xff]
    %v300 = vld [vmem:[#allocation7 + $0x110] sm:$0xff]
    %v301 = vld [vmem:[#allocation7 + $0x118] sm:$0xff]
    %v302 = vld [vmem:[#allocation7 + $0x120] sm:$0xff]
    %v303 = vld [vmem:[#allocation7 + $0x128] sm:$0xff]
    %v304 = vld [vmem:[#allocation7 + $0x130] sm:$0xff]
    %v305 = vld [vmem:[#allocation7 + $0x138] sm:$0xff]
    %v306 = vld [vmem:[#allocation7 + $0x140] sm:$0xff]
    %v307 = vld [vmem:[#allocation7 + $0x148] sm:$0xff]
    %v308 = vld [vmem:[#allocation7 + $0x150] sm:$0xff]
    %v309 = vld [vmem:[#allocation7 + $0x158] sm:$0xff]
    %v310 = vld [vmem:[#allocation7 + $0x160] sm:$0xff]
    %v311 = vld [vmem:[#allocation7 + $0x168] sm:$0xff]
    %v312 = vld [vmem:[#allocation7 + $0x170] sm:$0xff]
    %v313 = vld [vmem:[#allocation7 + $0x178] sm:$0xff]
    %v314 = vld [vmem:[#allocation7 + $0x180] sm:$0xff]
    %v315 = vld [vmem:[#allocation7 + $0x188] sm:$0xff]
    %v316 = vld [vmem:[#allocation7 + $0x190] sm:$0xff]
    %v317 = vld [vmem:[#allocation7 + $0x198] sm:$0xff]
    %v318 = vld [vmem:[#allocation7 + $0x1a0] sm:$0xff]
    %v319 = vld [vmem:[#allocation7 + $0x1a8] sm:$0xff]
    %v320 = vld [vmem:[#allocation7 + $0x1b0] sm:$0xff]
    %v321 = vld [vmem:[#allocation7 + $0x1b8] sm:$0xff]
    %v322 = vld [vmem:[#allocation7 + $0x1c0] sm:$0xff]
    %v323 = vld [vmem:[#allocation7 + $0x1c8] sm:$0xff]
    %v324 = vld [vmem:[#allocation7 + $0x1d0] sm:$0xff]
    %v325 = vld [vmem:[#allocation7 + $0x1d8] sm:$0xff]
    %v326 = vld [vmem:[#allocation7 + $0x1e0] sm:$0xff]
    %v327 = vld [vmem:[#allocation7 + $0x1e8] sm:$0xff]
    %v328 = vld [vmem:[#allocation7 + $0x1f0] sm:$0xff]
    %v329 = vld [vmem:[#allocation7 + $0x1f8] sm:$0xff]
    %v330 = vld [vmem:[%s4] sm:$0x1]
    %v332 = vlaneseq
    %v333 = vshrl.u32 %v332, 7
    %v334 = vsub.s32 0, %v333
    %v335 = vrot.slane %v330, %v334
    %337 = vmatprep.subr.mxu0 0.0
    %338 = vmatpush1.msra.mxu0 %v266
    %339 = vmatprep.subr.mxu0 0.0
    %340 = vmatpush1.msra.mxu0 %v267
    %341 = vmatprep.subr.mxu0 0.0
    %342 = vmatpush1.msra.mxu0 %v268
    %343 = vmatprep.subr.mxu0 0.0
    %344 = vmatpush1.msra.mxu0 %v269
    %345 = vmatprep.subr.mxu0 0.0
    %346 = vmatpush1.msra.mxu0 %v270
    %347 = vmatprep.subr.mxu0 0.0
    %348 = vmatpush1.msra.mxu0 %v271
    %349 = vmatprep.subr.mxu0 0.0
    %350 = vmatpush1.msra.mxu0 %v272
    %351 = vmatprep.subr.mxu0 0.0
    %352 = vmatpush1.msra.mxu0 %v273
    %353 = vmatprep.subr.mxu0 0.0
    %354 = vmatpush1.msra.mxu0 %v274
    %355 = vmatprep.subr.mxu0 0.0
    %356 = vmatpush1.msra.mxu0 %v275
    %357 = vmatprep.subr.mxu0 0.0
    %358 = vmatpush1.msra.mxu0 %v276
    %359 = vmatprep.subr.mxu0 0.0
    %360 = vmatpush1.msra.mxu0 %v277
    %361 = vmatprep.subr.mxu0 0.0
    %362 = vmatpush1.msra.mxu0 %v278
    %363 = vmatprep.subr.mxu0 0.0
    %364 = vmatpush1.msra.mxu0 %v279
    %365 = vmatprep.subr.mxu0 0.0
    %366 = vmatpush1.msra.mxu0 %v280
    %367 = vmatprep.subr.mxu0 0.0
    %368 = vmatpush1.msra.mxu0 %v281
    %369 = vmatprep.subr.mxu0 0.0
    %370 = vmatpush1.msra.mxu0 %v282
    %371 = vmatprep.subr.mxu0 0.0
    %372 = vmatpush1.msra.mxu0 %v283
    %373 = vmatprep.subr.mxu0 0.0
    %374 = vmatpush1.msra.mxu0 %v284
    %375 = vmatprep.subr.mxu0 0.0
    %376 = vmatpush1.msra.mxu0 %v285
    %377 = vmatprep.subr.mxu0 0.0
    %378 = vmatpush1.msra.mxu0 %v286
    %379 = vmatprep.subr.mxu0 0.0
    %380 = vmatpush1.msra.mxu0 %v287
    %381 = vmatprep.subr.mxu0 0.0
    %382 = vmatpush1.msra.mxu0 %v288
    %383 = vmatprep.subr.mxu0 0.0
    %384 = vmatpush1.msra.mxu0 %v289
    %385 = vmatprep.subr.mxu0 0.0
    %386 = vmatpush1.msra.mxu0 %v290
    %387 = vmatprep.subr.mxu0 0.0
    %388 = vmatpush1.msra.mxu0 %v291
    %389 = vmatprep.subr.mxu0 0.0
    %390 = vmatpush1.msra.mxu0 %v292
    %391 = vmatprep.subr.mxu0 0.0
    %392 = vmatpush1.msra.mxu0 %v293
    %393 = vmatprep.subr.mxu0 0.0
    %394 = vmatpush1.msra.mxu0 %v294
    %395 = vmatprep.subr.mxu0 0.0
    %396 = vmatpush1.msra.mxu0 %v295
    %397 = vmatprep.subr.mxu0 0.0
    %398 = vmatpush1.msra.mxu0 %v296
    %399 = vmatprep.subr.mxu0 0.0
    %400 = vmatpush1.msra.mxu0 %v297
    %401 = vmatprep.mubr.f32.mxu0 %v263
    %402 = vmatmul.mubr.f32.gmra.mrb[0].mxu0 %v262
    %v403 = vpop.f32.mrb[0].mxu0
    %v404 = vadd.f32 %v335, %v403
    %v405 = vpop.f32.mrb[0].mxu0
    %406 = vdwg.mxu0
    %407 = vmatprep.subr.mxu0 0.0
    %408 = vmatpush1.msra.mxu0 %v298
    %409 = vmatprep.subr.mxu0 0.0
    %410 = vmatpush1.msra.mxu0 %v299
    %411 = vmatprep.subr.mxu0 0.0
    %412 = vmatpush1.msra.mxu0 %v300
    %413 = vmatprep.subr.mxu0 0.0
    %414 = vmatpush1.msra.mxu0 %v301
    %415 = vmatprep.subr.mxu0 0.0
    %416 = vmatpush1.msra.mxu0 %v302
    %417 = vmatprep.subr.mxu0 0.0
    %418 = vmatpush1.msra.mxu0 %v303
    %419 = vmatprep.subr.mxu0 0.0
    %420 = vmatpush1.msra.mxu0 %v304
    %421 = vmatprep.subr.mxu0 0.0
    %422 = vmatpush1.msra.mxu0 %v305
    %423 = vmatprep.subr.mxu0 0.0
    %424 = vmatpush1.msra.mxu0 %v306
    %425 = vmatprep.subr.mxu0 0.0
    %426 = vmatpush1.msra.mxu0 %v307
    %427 = vmatprep.subr.mxu0 0.0
    %428 = vmatpush1.msra.mxu0 %v308
    %429 = vmatprep.subr.mxu0 0.0
    %430 = vmatpush1.msra.mxu0 %v309
    %431 = vmatprep.subr.mxu0 0.0
    %432 = vmatpush1.msra.mxu0 %v310
    %433 = vmatprep.subr.mxu0 0.0
    %434 = vmatpush1.msra.mxu0 %v311
    %435 = vmatprep.subr.mxu0 0.0
    %436 = vmatpush1.msra.mxu0 %v312
    %437 = vmatprep.subr.mxu0 0.0
    %438 = vmatpush1.msra.mxu0 %v313
    %439 = vmatprep.subr.mxu0 0.0
    %440 = vmatpush1.msra.mxu0 %v314
    %441 = vmatprep.subr.mxu0 0.0
    %442 = vmatpush1.msra.mxu0 %v315
    %443 = vmatprep.subr.mxu0 0.0
    %444 = vmatpush1.msra.mxu0 %v316
    %445 = vmatprep.subr.mxu0 0.0
    %446 = vmatpush1.msra.mxu0 %v317
    %447 = vmatprep.subr.mxu0 0.0
    %448 = vmatpush1.msra.mxu0 %v318
    %449 = vmatprep.subr.mxu0 0.0
    %450 = vmatpush1.msra.mxu0 %v319
    %451 = vmatprep.subr.mxu0 0.0
    %452 = vmatpush1.msra.mxu0 %v320
    %453 = vmatprep.subr.mxu0 0.0
    %454 = vmatpush1.msra.mxu0 %v321
    %455 = vmatprep.subr.mxu0 0.0
    %456 = vmatpush1.msra.mxu0 %v322
    %457 = vmatprep.subr.mxu0 0.0
    %458 = vmatpush1.msra.mxu0 %v323
    %459 = vmatprep.subr.mxu0 0.0
    %460 = vmatpush1.msra.mxu0 %v324
    %461 = vmatprep.subr.mxu0 0.0
    %462 = vmatpush1.msra.mxu0 %v325
    %463 = vmatprep.subr.mxu0 0.0
    %464 = vmatpush1.msra.mxu0 %v326
    %465 = vmatprep.subr.mxu0 0.0
    %466 = vmatpush1.msra.mxu0 %v327
    %467 = vmatprep.subr.mxu0 0.0
    %468 = vmatpush1.msra.mxu0 %v328
    %469 = vmatprep.subr.mxu0 0.0
    %470 = vmatpush1.msra.mxu0 %v329
    %471 = vmatprep.mubr.f32.mxu0 %v265
    %472 = vmatmul.mubr.f32.gmra.mrb[0].mxu0 %v264
    %v473 = vpop.f32.mrb[0].mxu0
    %v474 = vadd.f32 %v404, %v473
    %v475 = vpop.f32.mrb[0].mxu0
    %476 = vdwg.mxu0
    %v477 = vmax.f32 %v474, 0.0
    %478 = vst [vmem:[#allocation8] sm:$0xff] %v477
    // Predicated region
    $region34: #{tpu_custom_call.1} parent=1 // pred_check
      _
    $region35: #{tpu_custom_call.1} parent=1 // pred_check_branch
      %480 = sbr.rel (0) target = $region37
    $region36: #{tpu_custom_call.1} parent=1 // pred_region
      %s482 = ssub.s32 128, 128
      %483 = vsyncadd [#allocation4], %s482
      %s485 = sshll.u32 [#allocation8], 4
      %s486 = int_to_ptr.vmem [resolvable:$true] %s485
      %488 = dma.vmem_to_hbm [thread:$0]  %s486, 128, %s5, [#allocation4]
    $region37: #{tpu_custom_call.1} parent=1 // pred_fallthru
      _
    // Predicated region
    $region38: #{tpu_custom_call.1} parent=1 // pred_check
      _
    $region39: #{tpu_custom_call.1} parent=1 // pred_check_branch
      %490 = sbr.rel (0) target = $region41
    $region40: #{tpu_custom_call.1} parent=1 // pred_region
      %491 = dma.done [#allocation4], 128
    $region41: #{tpu_custom_call.1} parent=1 // pred_fallthru
      _
    %492 = vsyncpa [#allocation3], 1
    %493 = vsyncpa [#allocation6], 1
    %494 = vsyncpa [#allocation4], 1

</llo_original>
